<compile_context>
chip_gen: v5e
topology: v5e:2x2
jax: 0.10.0
libtpu: 0.0.40
codegen_flags: <defaults>
</compile_context>

<pallas_src>
import math

import jax
import jax.numpy as jnp
from jax.experimental import pallas as pl
from jax.experimental.pallas import tpu as pltpu

CONSTANT = 10

_COLS = 1024        # lane-dense width, multiple of 128 -> unmasked loads/stores
_MAX_TILE_R = 256   # sublane tile, multiple of 8; 256*1024*4B = 1 MiB / buffer


def _mul_const_kernel(x_ref, o_ref):
    # Pure elementwise multiply; integer math, no casts needed.
    o_ref[...] = x_ref[...] * CONSTANT


def mul_constant(x):
    """Elementwise 10 * x via a tiled, pipelined Pallas TPU kernel."""
    orig_shape = x.shape
    dtype = x.dtype
    total = math.prod(orig_shape)

    # Flatten and pad up to a (rows_padded, _COLS) lane-dense 2D slab.
    rows = pl.cdiv(total, _COLS)
    tile_r = min(_MAX_TILE_R, ((rows + 7) // 8) * 8)   # multiple of 8, size-adaptive
    rows_padded = pl.cdiv(rows, tile_r) * tile_r
    padded_total = rows_padded * _COLS

    flat = x.reshape(-1)
    if padded_total != total:
        flat = jnp.pad(flat, (0, padded_total - total))
    x2 = flat.reshape(rows_padded, _COLS)

    grid = (rows_padded // tile_r,)

    out = pl.pallas_call(
        _mul_const_kernel,
        out_shape=jax.ShapeDtypeStruct((rows_padded, _COLS), dtype),
        grid_spec=pltpu.PrefetchScalarGridSpec(
            num_scalar_prefetch=0,
            grid=grid,
            in_specs=[pl.BlockSpec((tile_r, _COLS), lambda i: (i, 0))],
            out_specs=pl.BlockSpec((tile_r, _COLS), lambda i: (i, 0)),
        ),
        compiler_params=pltpu.CompilerParams(
            dimension_semantics=("parallel",),  # independent rows -> megacore on v7x
        ),
    )(x2)

    return out.reshape(-1)[:total].reshape(orig_shape)


if __name__ == "__main__":
    key = jax.random.PRNGKey(0)
    # "Long" input in the original test; int32 on TPU (same values/semantics here).
    x = jax.random.randint(key, (2, 4, 16, 16), minval=-100, maxval=100,
                           dtype=jnp.int32)

    y = mul_constant(x)
    jax.block_until_ready(y)

    y_ref = 10 * x
    assert y.shape == x.shape, y.shape
    assert y.dtype == x.dtype, y.dtype
    assert bool(jnp.all(y == y_ref)), "mismatch vs reference"

    print("KERNEL_OK")
</pallas_src>

<mosaic_0001>
module attributes {stable_mosaic.version = 11 : i64} {
  func.func @_mul_const_kernel(%arg0: i32, %arg1: memref<8x1024xi32, #tpu.memory_space<vmem>>, %arg2: memref<8x1024xi32, #tpu.memory_space<vmem>>) attributes {dimension_semantics = [#tpu.dimension_semantics<parallel>], iteration_bounds = array<i64: 1>, scalar_prefetch = 0 : i64, scratch_operands = 0 : i64, tpu.core_type = #tpu.core_type<tc>, window_params = [{transform_indices = @transform_0, window_bounds = array<i64: 8, 1024>}, {transform_indices = @transform_1, window_bounds = array<i64: 8, 1024>}]} {
    %c0 = arith.constant 0 : index
    %c0_0 = arith.constant 0 : index
    %0 = vector.load %arg1[%c0, %c0_0] : memref<8x1024xi32, #tpu.memory_space<vmem>>, vector<8x1024xi32>
    %c10_i32 = arith.constant 10 : i32
    %1 = vector.broadcast %c10_i32 : i32 to vector<8x1024xi32>
    %2 = arith.muli %0, %1 : vector<8x1024xi32>
    %c0_1 = arith.constant 0 : index
    %c0_2 = arith.constant 0 : index
    %3 = vector.load %arg2[%c0_1, %c0_2] : memref<8x1024xi32, #tpu.memory_space<vmem>>, vector<8x1024xi32>
    tpu.vector_store %arg2[%c0_1, %c0_2], %2 {strides = array<i32>} : memref<8x1024xi32, #tpu.memory_space<vmem>>, vector<8x1024xi32>,
    return
  }
  func.func @transform_0(%arg0: i32) -> (i32, i32) {
    %c0_i32 = arith.constant 0 : i32
    %c0_i32_0 = arith.constant 0 : i32
    return %arg0, %c0_i32 : i32, i32
  }
  func.func @transform_1(%arg0: i32) -> (i32, i32) {
    %c0_i32 = arith.constant 0 : i32
    %c0_i32_0 = arith.constant 0 : i32
    return %arg0, %c0_i32 : i32, i32
  }
}

</mosaic_0001>

<llo_original>
// kernel: tpu_custom_call.1
$region0: #{tpu_custom_call.1}
  #allocation0 [shape = 'u32[]', space=smem, size = 0x4, offset = 0x4, fixed_abs, tag = 'smem constant byte address 0x4 - core index']
  #allocation1 [shape = 'u32[72,128]{1,0:T(1,128)}', space=vmem, size = 0x9000, scoped, tag = 'internal scratch']
  %s0 = inlined_call_operand.hbm [shape: s32[8,1024], index: 0, kind: input, shape index: {}]
  %s1 = inlined_call_operand.hbm [shape: s32[8,1024], index: 1, kind: output, shape index: {}]
  %s2 = sld [smem:[#allocation0]]
  $region18: #{tpu_custom_call.1} parent=0
    _
  %s4 = ssub.s32 1, %s2
  %s5 = scalar_select 0, %s4, %s2
  $region1: #{tpu_custom_call.1} parent=0
    #allocation2 [shape = 'u8[32768]{0}', space=vmem, size = 0x8000, scoped, tag = 'input window, operand 0, single buffered']
    #allocation3 [shape = 's32[1]{0}', space=sflag, size = 0x4, scoped, tag = 'scoped memory for tpu_custom_call.1']
    #allocation4 [shape = 's32[1]{0}', space=sflag, size = 0x4, scoped, tag = 'scoped memory for tpu_custom_call.1']
    #allocation5 [shape = 'u8[32768]{0}', space=vmem, size = 0x8000, scoped, tag = 'output window, operand 0, single buffered']
    %6 = vsyncpa [#allocation3], 0
    %7 = vsyncpa [#allocation4], 0
    // Predicated region
    $region2: #{tpu_custom_call.1} parent=1 // pred_check
      _
    $region3: #{tpu_custom_call.1} parent=1 // pred_check_branch
      %9 = sbr.rel (0) target = $region5
    $region4: #{tpu_custom_call.1} parent=1 // pred_region
      %11 = vsyncadd [#allocation3], 0
      %s13 = sshll.u32 %s0, 4
      %s14 = int_to_ptr.hbm [resolvable:$true] %s13
      %s15 = sshll.u32 [#allocation2], 4
      %s16 = int_to_ptr.vmem [resolvable:$true] %s15
      %18 = dma.hbm_to_vmem [thread:$0]  %s14, 1024, %s16, [#allocation3]
    $region5: #{tpu_custom_call.1} parent=1 // pred_fallthru
      _
    // Predicated region
    $region6: #{tpu_custom_call.1} parent=1 // pred_check
      _
    $region7: #{tpu_custom_call.1} parent=1 // pred_check_branch
      %20 = sbr.rel (0) target = $region9
    $region8: #{tpu_custom_call.1} parent=1 // pred_region
      %22 = dma.done [#allocation3], 1024
    $region9: #{tpu_custom_call.1} parent=1 // pred_fallthru
      _
    %v23 = vld [vmem:[#allocation2] sm:$0xff]
    %v24 = vld [vmem:[#allocation2 + $0x8] sm:$0xff]
    %v25 = vld [vmem:[#allocation2 + $0x10] sm:$0xff]
    %v26 = vld [vmem:[#allocation2 + $0x18] sm:$0xff]
    %v27 = vld [vmem:[#allocation2 + $0x20] sm:$0xff]
    %v28 = vld [vmem:[#allocation2 + $0x28] sm:$0xff]
    %v29 = vld [vmem:[#allocation2 + $0x30] sm:$0xff]
    %v30 = vld [vmem:[#allocation2 + $0x38] sm:$0xff]
    %v31 = vmul.u32 %v23, 10
    %v32 = vmul.u32 %v24, 10
    %v33 = vmul.u32 %v25, 10
    %v34 = vmul.u32 %v26, 10
    %v35 = vmul.u32 %v27, 10
    %v36 = vmul.u32 %v28, 10
    %v37 = vmul.u32 %v29, 10
    %v38 = vmul.u32 %v30, 10
    %39 = vst [vmem:[#allocation5] sm:$0xff] %v31
    %40 = vst [vmem:[#allocation5 + $0x8] sm:$0xff] %v32
    %41 = vst [vmem:[#allocation5 + $0x10] sm:$0xff] %v33
    %42 = vst [vmem:[#allocation5 + $0x18] sm:$0xff] %v34
    %43 = vst [vmem:[#allocation5 + $0x20] sm:$0xff] %v35
    %44 = vst [vmem:[#allocation5 + $0x28] sm:$0xff] %v36
    %45 = vst [vmem:[#allocation5 + $0x30] sm:$0xff] %v37
    %46 = vst [vmem:[#allocation5 + $0x38] sm:$0xff] %v38
    // Predicated region
    $region10: #{tpu_custom_call.1} parent=1 // pred_check
      _
    $region11: #{tpu_custom_call.1} parent=1 // pred_check_branch
      %48 = sbr.rel (0) target = $region13
    $region12: #{tpu_custom_call.1} parent=1 // pred_region
      %50 = vsyncadd [#allocation4], 0
      %s52 = sshll.u32 [#allocation5], 4
      %s53 = int_to_ptr.vmem [resolvable:$true] %s52
      %s54 = sshll.u32 %s1, 4
      %s55 = int_to_ptr.hbm [resolvable:$true] %s54
      %57 = dma.vmem_to_hbm [thread:$0]  %s53, 1024, %s55, [#allocation4]
    $region13: #{tpu_custom_call.1} parent=1 // pred_fallthru
      _
    // Predicated region
    $region14: #{tpu_custom_call.1} parent=1 // pred_check
      _
    $region15: #{tpu_custom_call.1} parent=1 // pred_check_branch
      %59 = sbr.rel (0) target = $region17
    $region16: #{tpu_custom_call.1} parent=1 // pred_region
      %61 = dma.done [#allocation4], 1024
    $region17: #{tpu_custom_call.1} parent=1 // pred_fallthru
      _
    %62 = vsyncpa [#allocation3], 1
    %63 = vsyncpa [#allocation4], 1

</llo_original>
